<compile_context>
chip_gen: v6e
topology: v6e:2x2x1
jax: 0.10.0
libtpu: 0.0.40
codegen_flags: <defaults>
</compile_context>

<pallas_src>
import jax
import jax.numpy as jnp
from jax.experimental import pallas as pl
from jax.experimental.pallas import tpu as pltpu


_MAX_BLOCK_BYTES = 8 * 1024 * 1024      # cap: 4-5 buffers stay <= ~42 MiB (v7x-safe)
_SMALL_BLOCK_BYTES = 256 * 1024         # below this, deepen input pipelining
_LANE_WIDTHS = (32768, 16384, 8192, 4096, 2048, 1024, 512, 256, 128)


def _resolve_shape(total, shape):
    """Resolve a torch-style view shape (may contain a single -1)."""
    shape = list(shape)
    if -1 in shape:
        idx = shape.index(-1)
        known = 1
        for i, s in enumerate(shape):
            if i != idx:
                known *= s
        assert known > 0 and total % known == 0, "view shape incompatible"
        shape[idx] = total // known
    prod = 1
    for s in shape:
        prod *= s
    assert prod == total, "view shape incompatible with input size"
    return tuple(shape)


def pallas_view(x, shape):
    """torch View(shape).forward(x): metadata-only, zero HBM traffic."""
    return jnp.reshape(x, _resolve_shape(x.size, shape))


def _copy_kernel(x_ref, o_ref):
    # identity copy of the current lane-dense tile
    o_ref[...] = x_ref[...]


def _sublane_multiple(dtype):
    # f32 -> 8, bf16/f16 -> 16, int8/fp8 -> 32 (sub-32-bit packs along sublanes)
    return max(8, 32 // jnp.dtype(dtype).itemsize)


def _round_up(x, m):
    return ((x + m - 1) // m) * m


def pallas_view_copy(x, shape, *, block_bytes=_MAX_BLOCK_BYTES):
    """View with an explicit materializing identity copy through Pallas."""
    total = x.size
    out_shape = _resolve_shape(total, shape)
    if total == 0:
        return jnp.reshape(x, out_shape)

    block_bytes = min(block_bytes, _MAX_BLOCK_BYTES)

    # Widest lane-dense slab width (multiple of 128) that exactly tiles the
    # flat C-order data — avoids any wrapper-side pad/slice passes.
    width = None
    for w in _LANE_WIDTHS:
        if total % w == 0:
            width = w
            break
    if width is None:
        # TODO(synk): ragged totals (not a multiple of 128) would need a masked
        # pl.ds tail store; since .view is metadata-only, return the zero-copy
        # reshape instead of paying extra HBM passes.
        return jnp.reshape(x, out_shape)

    rows = total // width
    slab = jnp.reshape(x, (rows, width))   # C-order flatten, metadata-only

    itemsize = jnp.dtype(x.dtype).itemsize
    sub = _sublane_multiple(x.dtype)
    max_rows = max(1, block_bytes // (width * itemsize))

    if rows <= max_rows:
        # Whole row axis fits in one block: still try to split it into >=2
        # aligned tiles so the "parallel" axis shards across both v7x TCs.
        half = _round_up(pl.cdiv(rows, 2), sub)
        tile_rows = half if half < rows else rows
    else:
        tile_rows = max((max_rows // sub) * sub, sub)
        if tile_rows >= rows:
            tile_rows = rows
    grid = (pl.cdiv(rows, tile_rows),)      # partial last block stays masked

    tile_bytes = tile_rows * width * itemsize
    deep_pipeline = tile_bytes <= _SMALL_BLOCK_BYTES and grid[0] > 2
    in_depth = 3 if deep_pipeline else 2
    vmem_needed = (in_depth + 2) * tile_bytes + (2 << 20)
    vmem_limit = min(48 * 1024 * 1024, max(vmem_needed, 16 * 1024 * 1024))

    cost = pl.CostEstimate(flops=0, transcendentals=0,
                           bytes_accessed=2 * total * itemsize)

    def _build(in_spec):
        return pl.pallas_call(
            _copy_kernel,
            out_shape=jax.ShapeDtypeStruct((rows, width), x.dtype),
            grid_spec=pltpu.PrefetchScalarGridSpec(
                num_scalar_prefetch=0,
                grid=grid,
                in_specs=[in_spec],
                out_specs=pl.BlockSpec((tile_rows, width), lambda i: (i, 0)),
            ),
            compiler_params=pltpu.CompilerParams(
                dimension_semantics=("parallel",),
                vmem_limit_bytes=vmem_limit),
            cost_estimate=cost,
        )

    if deep_pipeline:
        try:
            copied = _build(
                pl.BlockSpec((tile_rows, width), lambda i: (i, 0),
                             pipeline_mode=pl.Buffered(3)))(slab)
        except Exception:
            # Fall back to default double buffering if Buffered(3) is rejected.
            copied = _build(
                pl.BlockSpec((tile_rows, width), lambda i: (i, 0)))(slab)
    else:
        copied = _build(
            pl.BlockSpec((tile_rows, width), lambda i: (i, 0)))(slab)

    return jnp.reshape(copied, out_shape)


if __name__ == "__main__":
    key = jax.random.PRNGKey(0)
    k0, k1, k2, k3 = jax.random.split(key, 4)

    # Shapes consistent with the module usage: (2, 4, 16, 16) -> (2, -1)
    x = jax.random.normal(k0, (2, 4, 16, 16), dtype=jnp.float32)
    ref = jnp.reshape(x, (2, 4 * 16 * 16))

    y_meta = jax.block_until_ready(pallas_view(x, (2, -1)))
    y_copy = jax.block_until_ready(pallas_view_copy(x, (2, -1)))
    assert y_meta.shape == ref.shape and y_copy.shape == ref.shape
    assert jnp.array_equal(y_meta, ref), "metadata view mismatch"
    assert jnp.array_equal(y_copy, ref), "pallas copy view mismatch"

    # Exercise the multi-block grid + masked partial tail + Buffered(3) path.
    x2 = jax.random.normal(k1, (301, 128), dtype=jnp.float32)
    y2 = jax.block_until_ready(
        pallas_view_copy(x2, (-1,), block_bytes=64 * 1024))
    assert jnp.array_equal(y2, jnp.reshape(x2, (-1,))), "partial-tail mismatch"

    # Exercise a sub-32-bit dtype (bf16) through the copy path.
    x3 = jax.random.normal(k2, (32, 16, 128), dtype=jnp.bfloat16)
    y3 = jax.block_until_ready(pallas_view_copy(x3, (32, -1)))
    assert jnp.array_equal(y3, jnp.reshape(x3, (32, -1))), "bf16 mismatch"

    # Exercise the >=2-grid-step split (megacore sharding) on the default path.
    x4 = jax.random.normal(k3, (512, 1024), dtype=jnp.float32)
    y4 = jax.block_until_ready(pallas_view_copy(x4, (64, -1)))
    assert jnp.array_equal(y4, jnp.reshape(x4, (64, -1))), "split-grid mismatch"

    print("KERNEL_OK")
</pallas_src>

<mosaic_0001>
module attributes {stable_mosaic.version = 11 : i64} {
  func.func @_copy_kernel(%arg0: i32, %arg1: memref<1x2048xf32, #tpu.memory_space<vmem>>, %arg2: memref<1x2048xf32, #tpu.memory_space<vmem>>) attributes {dimension_semantics = [#tpu.dimension_semantics<parallel>], iteration_bounds = array<i64: 1>, scalar_prefetch = 0 : i64, scratch_operands = 0 : i64, tpu.core_type = #tpu.core_type<tc>, window_params = [{transform_indices = @transform_0, window_bounds = array<i64: 1, 2048>}, {transform_indices = @transform_1, window_bounds = array<i64: 1, 2048>}]} {
    %c0 = arith.constant 0 : index
    %c0_0 = arith.constant 0 : index
    %0 = vector.load %arg1[%c0, %c0_0] : memref<1x2048xf32, #tpu.memory_space<vmem>>, vector<1x2048xf32>
    %c0_1 = arith.constant 0 : index
    %c0_2 = arith.constant 0 : index
    %1 = vector.load %arg2[%c0_1, %c0_2] : memref<1x2048xf32, #tpu.memory_space<vmem>>, vector<1x2048xf32>
    tpu.vector_store %arg2[%c0_1, %c0_2], %0 {strides = array<i32>} : memref<1x2048xf32, #tpu.memory_space<vmem>>, vector<1x2048xf32>,
    return
  }
  func.func @transform_0(%arg0: i32) -> (i32, i32) {
    %c0_i32 = arith.constant 0 : i32
    %c0_i32_0 = arith.constant 0 : i32
    return %arg0, %c0_i32 : i32, i32
  }
  func.func @transform_1(%arg0: i32) -> (i32, i32) {
    %c0_i32 = arith.constant 0 : i32
    %c0_i32_0 = arith.constant 0 : i32
    return %arg0, %c0_i32 : i32, i32
  }
}

</mosaic_0001>

<llo_original>
// kernel: tpu_custom_call.1
$region0: #{tpu_custom_call.1}
  #allocation0 [shape = 'u32[]', space=smem, size = 0x4, offset = 0x4, fixed_abs, tag = 'smem constant byte address 0x4 - core index']
  #allocation1 [shape = 'u32[144,128]{1,0:T(1,128)}', space=vmem, size = 0x12000, scoped, tag = 'internal scratch']
  %s0 = inlined_call_operand.hbm [shape: f32[1,2048], index: 0, kind: input, shape index: {}]
  %s1 = inlined_call_operand.hbm [shape: f32[1,2048], index: 1, kind: output, shape index: {}]
  %s2 = sld [smem:[#allocation0]]
  $region18: #{tpu_custom_call.1} parent=0
    _
  %s4 = ssub.s32 1, %s2
  %s5 = scalar_select 0, %s4, %s2
  $region1: #{tpu_custom_call.1} parent=0
    #allocation2 [shape = 'u8[8192]{0}', space=vmem, size = 0x2000, scoped, tag = 'input window, operand 0, single buffered']
    #allocation3 [shape = 's32[1]{0}', space=sflag, size = 0x4, scoped, tag = 'scoped memory for tpu_custom_call.1']
    #allocation4 [shape = 's32[1]{0}', space=sflag, size = 0x4, scoped, tag = 'scoped memory for tpu_custom_call.1']
    #allocation5 [shape = 'u8[8192]{0}', space=vmem, size = 0x2000, scoped, tag = 'output window, operand 0, single buffered']
    %6 = vsyncpa [#allocation3], 0
    %7 = vsyncpa [#allocation4], 0
    // Predicated region
    $region2: #{tpu_custom_call.1} parent=1 // pred_check
      _
    $region3: #{tpu_custom_call.1} parent=1 // pred_check_branch
      %9 = sbr.rel (0) target = $region5
    $region4: #{tpu_custom_call.1} parent=1 // pred_region
      %s11 = ssub.s32 256, 256
      %12 = vsyncadd [#allocation3], %s11
      %s14 = sshll.u32 [#allocation2], 4
      %s15 = int_to_ptr.vmem [resolvable:$true] %s14
      %17 = dma.hbm_to_vmem [thread:$0]  %s0, 256, %s15, [#allocation3]
    $region5: #{tpu_custom_call.1} parent=1 // pred_fallthru
      _
    // Predicated region
    $region6: #{tpu_custom_call.1} parent=1 // pred_check
      _
    $region7: #{tpu_custom_call.1} parent=1 // pred_check_branch
      %19 = sbr.rel (0) target = $region9
    $region8: #{tpu_custom_call.1} parent=1 // pred_region
      %20 = dma.done [#allocation3], 256
    $region9: #{tpu_custom_call.1} parent=1 // pred_fallthru
      _
    %v21 = vld [vmem:[#allocation2] sm:$0xff]
    %v22 = vld [vmem:[#allocation2 + $0x8] sm:$0xff]
    %23 = vst [vmem:[#allocation5] sm:$0xff] %v21
    %24 = vst [vmem:[#allocation5 + $0x8] sm:$0xff] %v22
    // Predicated region
    $region10: #{tpu_custom_call.1} parent=1 // pred_check
      _
    $region11: #{tpu_custom_call.1} parent=1 // pred_check_branch
      %26 = sbr.rel (0) target = $region13
    $region12: #{tpu_custom_call.1} parent=1 // pred_region
      %s28 = ssub.s32 256, 256
      %29 = vsyncadd [#allocation4], %s28
      %s31 = sshll.u32 [#allocation5], 4
      %s32 = int_to_ptr.vmem [resolvable:$true] %s31
      %34 = dma.vmem_to_hbm [thread:$0]  %s32, 256, %s1, [#allocation4]
    $region13: #{tpu_custom_call.1} parent=1 // pred_fallthru
      _
    // Predicated region
    $region14: #{tpu_custom_call.1} parent=1 // pred_check
      _
    $region15: #{tpu_custom_call.1} parent=1 // pred_check_branch
      %36 = sbr.rel (0) target = $region17
    $region16: #{tpu_custom_call.1} parent=1 // pred_region
      %37 = dma.done [#allocation4], 256
    $region17: #{tpu_custom_call.1} parent=1 // pred_fallthru
      _
    %38 = vsyncpa [#allocation3], 1
    %39 = vsyncpa [#allocation4], 1

</llo_original>
